<compile_context>
chip_gen: v7x
topology: tpu7x:2x2x1
jax: 0.10.0
libtpu: 0.0.40
codegen_flags: <defaults>
</compile_context>

<pallas_src>
import jax
import jax.numpy as jnp
from jax.experimental import pallas as pl
from jax.experimental.pallas import tpu as pltpu


_NUM_STRIPS = 8      # batch strips stacked on the sublane axis
_IN_FEATURES = 4
_HIDDEN = 3


def _simplenet_kernel(w1_ref, b1_ref, w2_ref, b2_ref, x_ref, out_ref):
    """Fused fc1 -> ReLU -> fc2 on one sublane/lane-dense batch tile (pure VPU).

    w1_ref : (12,) f32 SMEM  fc1.weight, PyTorch (3, 4) row-major flattened
    b1_ref : (3,)  f32 SMEM  fc1.bias
    w2_ref : (3,)  f32 SMEM  fc2.weight, PyTorch (1, 3) flattened
    b2_ref : (1,)  f32 SMEM  fc2.bias
    x_ref  : (32, TL) f32 VMEM   rows [8k, 8k+8) = feature k for the 8 strips
    out_ref: (8,  TL) f32 VMEM   row g = outputs for strip g
    """
    x0 = x_ref[0:8, :]      # feature 0, all 8 strips   (8, TL)
    x1 = x_ref[8:16, :]     # feature 1
    x2 = x_ref[16:24, :]    # feature 2
    x3 = x_ref[24:32, :]    # feature 3

    def hidden(j):
        # h_j = b1[j] + sum_k w1[j, k] * x_k   (scalar SMEM splats -> VPU FMAs)
        return (w1_ref[4 * j + 0] * x0
                + w1_ref[4 * j + 1] * x1
                + w1_ref[4 * j + 2] * x2
                + w1_ref[4 * j + 3] * x3
                + b1_ref[j])

    # y = b2 + sum_j w2[j] * relu(h_j); seed with the j=0 term (saves one pass).
    y = w2_ref[0] * jnp.maximum(hidden(0), 0.0) + b2_ref[0]
    y = y + w2_ref[1] * jnp.maximum(hidden(1), 0.0)
    y = y + w2_ref[2] * jnp.maximum(hidden(2), 0.0)
    out_ref[...] = y


def _forward_ref(x, w1, b1, w2, b2):
    """Plain-XLA forward (also used as small-batch fast path and test ref)."""
    x = jnp.asarray(x, jnp.float32)
    w1 = jnp.asarray(w1, jnp.float32)
    b1 = jnp.asarray(b1, jnp.float32)
    w2 = jnp.asarray(w2, jnp.float32)
    b2 = jnp.asarray(b2, jnp.float32)
    h = jnp.maximum(x @ w1.T + b1, 0.0)
    return h @ w2.T + b2


def _choose_lane_tile(batch, block_b):
    """Lanes per strip per grid step (multiple of 128)."""
    tl_req = max(128, (block_b // _NUM_STRIPS) // 128 * 128)
    # lanes needed if the whole batch were a single step
    lanes_one_step = pl.cdiv(pl.cdiv(batch, _NUM_STRIPS), 128) * 128
    tl = min(tl_req, lanes_one_step)
    # v7x megacore: prefer >= 2 grid steps when the batch allows it.
    if pl.cdiv(batch, _NUM_STRIPS * tl) == 1 and tl >= 256:
        tl = pl.cdiv(tl, 256) * 128
    return tl


def pack_input(x, lane_tile):
    """(B, 4) batch-major -> (32, L) packed layout (padded to whole tiles).

    packed[8*k + g, l] = x_padded[g*L + l, k]   (L = num_steps * lane_tile)
    """
    b = x.shape[0]
    num_steps = pl.cdiv(b, _NUM_STRIPS * lane_tile)
    lanes = num_steps * lane_tile
    bp = _NUM_STRIPS * lanes
    xpad = jnp.pad(jnp.asarray(x, jnp.float32), ((0, bp - b), (0, 0)))
    xp = xpad.reshape(_NUM_STRIPS, lanes, _IN_FEATURES).transpose(2, 0, 1)
    return xp.reshape(_NUM_STRIPS * _IN_FEATURES, lanes)


def simplenet_forward_packed(xp, w1, b1, w2, b2, *, lane_tile,
                             vmem_limit_bytes=32 * 1024 * 1024):
    """Run the kernel on an already-packed (32, L) input; returns packed (8, L)."""
    rows, lanes = xp.shape
    assert rows == _NUM_STRIPS * _IN_FEATURES
    assert lane_tile % 128 == 0 and lanes % lane_tile == 0
    num_steps = lanes // lane_tile
    bp = _NUM_STRIPS * lanes

    # Flatten the 19 parameters for SMEM residency (no per-step VMEM DMAs).
    w1f = jnp.asarray(w1, jnp.float32).reshape(-1)   # (12,)
    b1f = jnp.asarray(b1, jnp.float32).reshape(-1)   # (3,)
    w2f = jnp.asarray(w2, jnp.float32).reshape(-1)   # (3,)
    b2f = jnp.asarray(b2, jnp.float32).reshape(-1)   # (1,)

    return pl.pallas_call(
        _simplenet_kernel,
        out_shape=jax.ShapeDtypeStruct((_NUM_STRIPS, lanes), jnp.float32),
        grid_spec=pltpu.PrefetchScalarGridSpec(
            num_scalar_prefetch=0,
            grid=(num_steps,),
            in_specs=[
                pl.BlockSpec(memory_space=pltpu.MemorySpace.SMEM),   # w1f
                pl.BlockSpec(memory_space=pltpu.MemorySpace.SMEM),   # b1f
                pl.BlockSpec(memory_space=pltpu.MemorySpace.SMEM),   # w2f
                pl.BlockSpec(memory_space=pltpu.MemorySpace.SMEM),   # b2f
                # TODO(synk): add pipeline_mode=pl.Buffered(3) here if a v7x
                # trace still shows exposed DMA at step boundaries.
                pl.BlockSpec((rows, lane_tile), lambda i: (0, i)),   # x tile
            ],
            out_specs=pl.BlockSpec((_NUM_STRIPS, lane_tile), lambda i: (0, i)),
        ),
        compiler_params=pltpu.CompilerParams(
            dimension_semantics=("parallel",),   # independent batch tiles
            vmem_limit_bytes=vmem_limit_bytes,
        ),
        cost_estimate=pl.CostEstimate(
            flops=33 * bp, transcendentals=0, bytes_accessed=20 * bp),
    )(w1f, b1f, w2f, b2f, xp)


def simplenet_forward(x, w1, b1, w2, b2, *, block_b=131072,
                      min_kernel_batch=1024,
                      vmem_limit_bytes=32 * 1024 * 1024):
    """x: (B, 4) f32 batch-major (PyTorch layout).
    w1: (3, 4) fc1.weight, b1: (3,), w2: (1, 3) fc2.weight, b2: (1,).
    Returns (B, 1) f32 — same math as SimpleNet.forward (minus the .cpu() move).
    """
    B = x.shape[0]
    if B < min_kernel_batch:
        # Launch + per-step overhead dominates at tiny batches: plain XLA wins.
        return _forward_ref(x, w1, b1, w2, b2)

    lane_tile = _choose_lane_tile(B, block_b)
    xp = pack_input(x, lane_tile)
    out_packed = simplenet_forward_packed(
        xp, w1, b1, w2, b2, lane_tile=lane_tile,
        vmem_limit_bytes=vmem_limit_bytes)
    # Packed (8, L) flattens back to padded batch order; drop the pad rows.
    return out_packed.reshape(-1)[:B].reshape(B, 1)


def init_params(key):
    """Deterministic init matching nn.Linear (PyTorch (out, in) weight layout)."""
    k1, k2, k3, k4 = jax.random.split(key, 4)
    lim1 = 1.0 / jnp.sqrt(4.0)   # U(-1/sqrt(fan_in), 1/sqrt(fan_in))
    lim2 = 1.0 / jnp.sqrt(3.0)
    w1 = jax.random.uniform(k1, (3, 4), jnp.float32, -lim1, lim1)  # fc1.weight
    b1 = jax.random.uniform(k2, (3,), jnp.float32, -lim1, lim1)    # fc1.bias
    w2 = jax.random.uniform(k3, (1, 3), jnp.float32, -lim2, lim2)  # fc2.weight
    b2 = jax.random.uniform(k4, (1,), jnp.float32, -lim2, lim2)    # fc2.bias
    return w1, b1, w2, b2


if __name__ == "__main__":
    key = jax.random.PRNGKey(0)
    k_params, k_input = jax.random.split(key)

    w1, b1, w2, b2 = init_params(k_params)

    # Demo batch: large enough to take the kernel path, deliberately not a
    # multiple of the per-step batch, with a small block_b so the run
    # exercises a multi-step pipelined grid plus tail padding.
    B = 3000
    x = jax.random.normal(k_input, (B, 4), jnp.float32)

    out = simplenet_forward(x, w1, b1, w2, b2,
                            block_b=1024, min_kernel_batch=256)
    out = jax.block_until_ready(out)

    ref = _forward_ref(x, w1, b1, w2, b2)
    assert out.shape == (B, 1)
    assert jnp.allclose(out, ref, atol=1e-5, rtol=1e-5), float(
        jnp.max(jnp.abs(out - ref)))

    print("KERNEL_OK")
</pallas_src>

<mosaic_0001>
module attributes {stable_mosaic.version = 11 : i64} {
  func.func @_simplenet_kernel(%arg0: i32, %arg1: memref<12xf32, #tpu.memory_space<smem>>, %arg2: memref<3xf32, #tpu.memory_space<smem>>, %arg3: memref<3xf32, #tpu.memory_space<smem>>, %arg4: memref<1xf32, #tpu.memory_space<smem>>, %arg5: memref<32x128xf32, #tpu.memory_space<vmem>>, %arg6: memref<8x128xf32, #tpu.memory_space<vmem>>) attributes {dimension_semantics = [#tpu.dimension_semantics<parallel>], iteration_bounds = array<i64: 3>, scalar_prefetch = 0 : i64, scratch_operands = 0 : i64, tpu.core_type = #tpu.core_type<tc>, window_params = [{transform_indices = @transform_0, window_bounds = array<i64: 12>}, {transform_indices = @transform_1, window_bounds = array<i64: 3>}, {transform_indices = @transform_2, window_bounds = array<i64: 3>}, {transform_indices = @transform_3, window_bounds = array<i64: 1>}, {transform_indices = @transform_4, window_bounds = array<i64: 32, 128>}, {transform_indices = @transform_5, window_bounds = array<i64: 8, 128>}]} {
    %c0 = arith.constant 0 : index
    %c0_0 = arith.constant 0 : index
    %0 = vector.load %arg5[%c0, %c0_0] : memref<32x128xf32, #tpu.memory_space<vmem>>, vector<8x128xf32>
    %c8 = arith.constant 8 : index
    %c0_1 = arith.constant 0 : index
    %1 = vector.load %arg5[%c8, %c0_1] : memref<32x128xf32, #tpu.memory_space<vmem>>, vector<8x128xf32>
    %c16 = arith.constant 16 : index
    %c0_2 = arith.constant 0 : index
    %2 = vector.load %arg5[%c16, %c0_2] : memref<32x128xf32, #tpu.memory_space<vmem>>, vector<8x128xf32>
    %c24 = arith.constant 24 : index
    %c0_3 = arith.constant 0 : index
    %3 = vector.load %arg5[%c24, %c0_3] : memref<32x128xf32, #tpu.memory_space<vmem>>, vector<8x128xf32>
    %c0_4 = arith.constant 0 : index
    %4 = memref.load %arg3[%c0_4] : memref<3xf32, #tpu.memory_space<smem>>
    %c0_5 = arith.constant 0 : index
    %5 = memref.load %arg1[%c0_5] : memref<12xf32, #tpu.memory_space<smem>>
    %6 = vector.broadcast %5 : f32 to vector<8x128xf32>
    %7 = arith.mulf %6, %0 : vector<8x128xf32>
    %c1 = arith.constant 1 : index
    %8 = memref.load %arg1[%c1] : memref<12xf32, #tpu.memory_space<smem>>
    %9 = vector.broadcast %8 : f32 to vector<8x128xf32>
    %10 = arith.mulf %9, %1 : vector<8x128xf32>
    %11 = arith.addf %7, %10 : vector<8x128xf32>
    %c2 = arith.constant 2 : index
    %12 = memref.load %arg1[%c2] : memref<12xf32, #tpu.memory_space<smem>>
    %13 = vector.broadcast %12 : f32 to vector<8x128xf32>
    %14 = arith.mulf %13, %2 : vector<8x128xf32>
    %15 = arith.addf %11, %14 : vector<8x128xf32>
    %c3 = arith.constant 3 : index
    %16 = memref.load %arg1[%c3] : memref<12xf32, #tpu.memory_space<smem>>
    %17 = vector.broadcast %16 : f32 to vector<8x128xf32>
    %18 = arith.mulf %17, %3 : vector<8x128xf32>
    %19 = arith.addf %15, %18 : vector<8x128xf32>
    %c0_6 = arith.constant 0 : index
    %20 = memref.load %arg2[%c0_6] : memref<3xf32, #tpu.memory_space<smem>>
    %21 = vector.broadcast %20 : f32 to vector<8x128xf32>
    %22 = arith.addf %19, %21 : vector<8x128xf32>
    %cst = arith.constant 0.000000e+00 : f32
    %23 = vector.broadcast %cst : f32 to vector<8x128xf32>
    %24 = arith.maximumf %22, %23 : vector<8x128xf32>
    %25 = vector.broadcast %4 : f32 to vector<8x128xf32>
    %26 = arith.mulf %25, %24 : vector<8x128xf32>
    %c0_7 = arith.constant 0 : index
    %27 = memref.load %arg4[%c0_7] : memref<1xf32, #tpu.memory_space<smem>>
    %28 = vector.broadcast %27 : f32 to vector<8x128xf32>
    %29 = arith.addf %26, %28 : vector<8x128xf32>
    %c1_8 = arith.constant 1 : index
    %30 = memref.load %arg3[%c1_8] : memref<3xf32, #tpu.memory_space<smem>>
    %c4 = arith.constant 4 : index
    %31 = memref.load %arg1[%c4] : memref<12xf32, #tpu.memory_space<smem>>
    %32 = vector.broadcast %31 : f32 to vector<8x128xf32>
    %33 = arith.mulf %32, %0 : vector<8x128xf32>
    %c5 = arith.constant 5 : index
    %34 = memref.load %arg1[%c5] : memref<12xf32, #tpu.memory_space<smem>>
    %35 = vector.broadcast %34 : f32 to vector<8x128xf32>
    %36 = arith.mulf %35, %1 : vector<8x128xf32>
    %37 = arith.addf %33, %36 : vector<8x128xf32>
    %c6 = arith.constant 6 : index
    %38 = memref.load %arg1[%c6] : memref<12xf32, #tpu.memory_space<smem>>
    %39 = vector.broadcast %38 : f32 to vector<8x128xf32>
    %40 = arith.mulf %39, %2 : vector<8x128xf32>
    %41 = arith.addf %37, %40 : vector<8x128xf32>
    %c7 = arith.constant 7 : index
    %42 = memref.load %arg1[%c7] : memref<12xf32, #tpu.memory_space<smem>>
    %43 = vector.broadcast %42 : f32 to vector<8x128xf32>
    %44 = arith.mulf %43, %3 : vector<8x128xf32>
    %45 = arith.addf %41, %44 : vector<8x128xf32>
    %c1_9 = arith.constant 1 : index
    %46 = memref.load %arg2[%c1_9] : memref<3xf32, #tpu.memory_space<smem>>
    %47 = vector.broadcast %46 : f32 to vector<8x128xf32>
    %48 = arith.addf %45, %47 : vector<8x128xf32>
    %cst_10 = arith.constant 0.000000e+00 : f32
    %49 = vector.broadcast %cst_10 : f32 to vector<8x128xf32>
    %50 = arith.maximumf %48, %49 : vector<8x128xf32>
    %51 = vector.broadcast %30 : f32 to vector<8x128xf32>
    %52 = arith.mulf %51, %50 : vector<8x128xf32>
    %53 = arith.addf %29, %52 : vector<8x128xf32>
    %c2_11 = arith.constant 2 : index
    %54 = memref.load %arg3[%c2_11] : memref<3xf32, #tpu.memory_space<smem>>
    %c8_12 = arith.constant 8 : index
    %55 = memref.load %arg1[%c8_12] : memref<12xf32, #tpu.memory_space<smem>>
    %56 = vector.broadcast %55 : f32 to vector<8x128xf32>
    %57 = arith.mulf %56, %0 : vector<8x128xf32>
    %c9 = arith.constant 9 : index
    %58 = memref.load %arg1[%c9] : memref<12xf32, #tpu.memory_space<smem>>
    %59 = vector.broadcast %58 : f32 to vector<8x128xf32>
    %60 = arith.mulf %59, %1 : vector<8x128xf32>
    %61 = arith.addf %57, %60 : vector<8x128xf32>
    %c10 = arith.constant 10 : index
    %62 = memref.load %arg1[%c10] : memref<12xf32, #tpu.memory_space<smem>>
    %63 = vector.broadcast %62 : f32 to vector<8x128xf32>
    %64 = arith.mulf %63, %2 : vector<8x128xf32>
    %65 = arith.addf %61, %64 : vector<8x128xf32>
    %c11 = arith.constant 11 : index
    %66 = memref.load %arg1[%c11] : memref<12xf32, #tpu.memory_space<smem>>
    %67 = vector.broadcast %66 : f32 to vector<8x128xf32>
    %68 = arith.mulf %67, %3 : vector<8x128xf32>
    %69 = arith.addf %65, %68 : vector<8x128xf32>
    %c2_13 = arith.constant 2 : index
    %70 = memref.load %arg2[%c2_13] : memref<3xf32, #tpu.memory_space<smem>>
    %71 = vector.broadcast %70 : f32 to vector<8x128xf32>
    %72 = arith.addf %69, %71 : vector<8x128xf32>
    %cst_14 = arith.constant 0.000000e+00 : f32
    %73 = vector.broadcast %cst_14 : f32 to vector<8x128xf32>
    %74 = arith.maximumf %72, %73 : vector<8x128xf32>
    %75 = vector.broadcast %54 : f32 to vector<8x128xf32>
    %76 = arith.mulf %75, %74 : vector<8x128xf32>
    %77 = arith.addf %53, %76 : vector<8x128xf32>
    %c0_15 = arith.constant 0 : index
    %c0_16 = arith.constant 0 : index
    %78 = vector.load %arg6[%c0_15, %c0_16] : memref<8x128xf32, #tpu.memory_space<vmem>>, vector<8x128xf32>
    tpu.vector_store %arg6[%c0_15, %c0_16], %77 {strides = array<i32>} : memref<8x128xf32, #tpu.memory_space<vmem>>, vector<8x128xf32>,
    return
  }
  func.func @transform_0(%arg0: i32) -> i32 {
    %c0_i32 = arith.constant 0 : i32
    %c0_i32_0 = arith.constant 0 : i32
    return %c0_i32 : i32
  }
  func.func @transform_1(%arg0: i32) -> i32 {
    %c0_i32 = arith.constant 0 : i32
    %c0_i32_0 = arith.constant 0 : i32
    return %c0_i32 : i32
  }
  func.func @transform_2(%arg0: i32) -> i32 {
    %c0_i32 = arith.constant 0 : i32
    %c0_i32_0 = arith.constant 0 : i32
    return %c0_i32 : i32
  }
  func.func @transform_3(%arg0: i32) -> i32 {
    %c0_i32 = arith.constant 0 : i32
    %c0_i32_0 = arith.constant 0 : i32
    return %c0_i32 : i32
  }
  func.func @transform_4(%arg0: i32) -> (i32, i32) {
    %c0_i32 = arith.constant 0 : i32
    %c0_i32_0 = arith.constant 0 : i32
    return %c0_i32, %arg0 : i32, i32
  }
  func.func @transform_5(%arg0: i32) -> (i32, i32) {
    %c0_i32 = arith.constant 0 : i32
    %c0_i32_0 = arith.constant 0 : i32
    return %c0_i32, %arg0 : i32, i32
  }
}

</mosaic_0001>

<llo_original>
// kernel: tpu_custom_call.1
$region0: #{tpu_custom_call.1}
  #allocation0 [shape = 'u32[]', space=smem, size = 0x4, offset = 0x4, fixed_abs, tag = 'smem constant byte address 0x4 - core index']
  #allocation1 [shape = 'u32[144,128]{1,0:T(1,128)}', space=vmem, size = 0x12000, scoped, tag = 'internal scratch']
  #allocation2 [shape = 'f32[1]{0:T(128)S(6)}', space=smem, size = 0x200, scoped, tag = 'scoped memory for tpu_custom_call.1']
  %s0 = inlined_call_operand.vmem [shape: f32[12], index: 0, kind: input, shape index: {}]
  %s1 = inlined_call_operand.vmem [shape: f32[3], index: 1, kind: input, shape index: {}]
  %s2 = inlined_call_operand.vmem [shape: f32[3], index: 2, kind: input, shape index: {}]
  %s3 = inlined_call_operand.<no memory space> [shape: f32[1], index: 3, kind: input, shape index: {}]
  %s4 = inlined_call_operand.hbm [shape: f32[32,384], index: 4, kind: input, shape index: {}]
  %s5 = inlined_call_operand.hbm [shape: f32[8,384], index: 5, kind: output, shape index: {}]
  %s6 = sld [smem:[#allocation0]]
  $region69: #{tpu_custom_call.1} parent=0
    _
  %s8 = ssub.s32 1, %s6
  %s9 = scalar_select 0, %s8, %s6
  %10 = sst [smem:[#allocation2]] %s3
  $region1: #{tpu_custom_call.1} parent=0
    #allocation3 [shape = 'u8[512]{0}', space=smem, size = 0x200, scoped, tag = 'input window, operand 0, single buffered']
    #allocation4 [shape = 's32[2]{0}', space=sflag, size = 0x8, scoped, tag = 'scoped memory for tpu_custom_call.1']
    #allocation5 [shape = 's32[2]{0}', space=sflag, size = 0x8, scoped, tag = 'scoped memory for tpu_custom_call.1']
    #allocation6 [shape = 's32[2]{0}', space=sflag, size = 0x8, scoped, tag = 'scoped memory for tpu_custom_call.1']
    #allocation7 [shape = 'u8[512]{0}', space=smem, size = 0x200, scoped, tag = 'input window, operand 1, single buffered']
    #allocation8 [shape = 's32[1]{0}', space=sflag, size = 0x4, scoped, tag = 'scoped memory for tpu_custom_call.1']
    #allocation9 [shape = 'u8[512]{0}', space=smem, size = 0x200, scoped, tag = 'input window, operand 2, single buffered']
    #allocation10 [shape = 'u8[32768]{0}', space=vmem, size = 0x8000, scoped, tag = 'input window, operand 4']
    #allocation11 [shape = 'u8[8192]{0}', space=vmem, size = 0x2000, scoped, tag = 'output window, operand 0']
    %11 = vsyncpa [#allocation6], 0
    %12 = vsyncpa [#allocation8], 0
    %13 = vsyncpa [#allocation4], 0
    %s14 = scalar_lea.sflag [#allocation4], 1
    %15 = vsyncpa %s14, 0
    %16 = vsyncpa [#allocation5], 0
    %s17 = scalar_lea.sflag [#allocation5], 1
    %18 = vsyncpa %s17, 0
    loop: start=0, step=1, limit=5
    $region2: #{tpu_custom_call.1} parent=1 // loop_pre_header
      _
    $region3: #{tpu_custom_call.1} parent=1 // loop_header
      %s20 = sphi 0, %s24
      %p21 = scmp.ge.s32.totalorder %s20, 5
      %s28 = sphi 0, %s28
      %s30 = sphi 0, %s28
      %s31 = sphi 0, %s30
      %s45 = sphi 0, %s31
      %s49 = sphi 0, %s49
      %s51 = sphi 0, %s49
      %s52 = sphi 0, %s51
      %s66 = sphi 0, %s52
      %s70 = sphi 0, %s70
      %s72 = sphi 0, %s70
      %s73 = sphi 0, %s72
      %s87 = sphi 0, %s73
      %s91 = sphi 0, %s91
      %s93 = sphi 0, %s91
      %s94 = sphi 0, %s93
      %s108 = sphi 0, %s94
      %s114 = sphi 0, %s116
      %s117 = sphi 0, %s114
      %s118 = sphi 0, %s117
      %s134 = sphi 0, %s118
      %s140 = sphi 0, %s142
      %s143 = sphi 0, %s140
      %s144 = sphi 0, %s143
      %s160 = sphi 0, %s144
    $region4: #{tpu_custom_call.1} parent=1 // loop_header_branch
      %23 = sbr.rel (%p21) target = $region8
    $region5: #{tpu_custom_call.1} parent=1 // loop_body
      %s25 = ssub.s32 %s20, 1
      %s26 = ssub.s32 %s20, 2
      %s27 = sadd.s32 %s20, 1
      %s29 = sadd.s32 %s28, 1
      %p32 = scmp.eq.s32.totalorder %s20, 2
      %p33 = scmp.ne.s32.totalorder %s28, %s30
      %p34 = scmp.eq.s32.totalorder %s20, 0
      %p35 = por %p33, %p34
      %p36 = scmp.ne.s32.totalorder %s28, %s30
      %p37 = scmp.eq.s32.totalorder %s25, 2
      %p38 = por %p36, %p37
      %p39 = scmp.ne.s32.totalorder %s30, %s31
      %p40 = scmp.eq.s32.totalorder %s25, 0
      %p41 = por %p39, %p40
      %p42 = scmp.ne.s32.totalorder %s30, %s31
      %p43 = scmp.eq.s32.totalorder %s26, 2
      %p44 = por %p42, %p43
      %p46 = scmp.ne.s32.totalorder %s31, %s45
      %p47 = scmp.eq.s32.totalorder %s26, 0
      %p48 = por %p46, %p47
      %s50 = sadd.s32 %s49, 1
      %p53 = scmp.eq.s32.totalorder %s20, 2
      %p54 = scmp.ne.s32.totalorder %s49, %s51
      %p55 = scmp.eq.s32.totalorder %s20, 0
      %p56 = por %p54, %p55
      %p57 = scmp.ne.s32.totalorder %s49, %s51
      %p58 = scmp.eq.s32.totalorder %s25, 2
      %p59 = por %p57, %p58
      %p60 = scmp.ne.s32.totalorder %s51, %s52
      %p61 = scmp.eq.s32.totalorder %s25, 0
      %p62 = por %p60, %p61
      %p63 = scmp.ne.s32.totalorder %s51, %s52
      %p64 = scmp.eq.s32.totalorder %s26, 2
      %p65 = por %p63, %p64
      %p67 = scmp.ne.s32.totalorder %s52, %s66
      %p68 = scmp.eq.s32.totalorder %s26, 0
      %p69 = por %p67, %p68
      %s71 = sadd.s32 %s70, 1
      %p74 = scmp.eq.s32.totalorder %s20, 2
      %p75 = scmp.ne.s32.totalorder %s70, %s72
      %p76 = scmp.eq.s32.totalorder %s20, 0
      %p77 = por %p75, %p76
      %p78 = scmp.ne.s32.totalorder %s70, %s72
      %p79 = scmp.eq.s32.totalorder %s25, 2
      %p80 = por %p78, %p79
      %p81 = scmp.ne.s32.totalorder %s72, %s73
      %p82 = scmp.eq.s32.totalorder %s25, 0
      %p83 = por %p81, %p82
      %p84 = scmp.ne.s32.totalorder %s72, %s73
      %p85 = scmp.eq.s32.totalorder %s26, 2
      %p86 = por %p84, %p85
      %p88 = scmp.ne.s32.totalorder %s73, %s87
      %p89 = scmp.eq.s32.totalorder %s26, 0
      %p90 = por %p88, %p89
      %s92 = sadd.s32 %s91, 1
      %p95 = scmp.eq.s32.totalorder %s20, 2
      %p96 = scmp.ne.s32.totalorder %s91, %s93
      %p97 = scmp.eq.s32.totalorder %s20, 0
      %p98 = por %p96, %p97
      %p99 = scmp.ne.s32.totalorder %s91, %s93
      %p100 = scmp.eq.s32.totalorder %s25, 2
      %p101 = por %p99, %p100
      %p102 = scmp.ne.s32.totalorder %s93, %s94
      %p103 = scmp.eq.s32.totalorder %s25, 0
      %p104 = por %p102, %p103
      %p105 = scmp.ne.s32.totalorder %s93, %s94
      %p106 = scmp.eq.s32.totalorder %s26, 2
      %p107 = por %p105, %p106
      %p109 = scmp.ne.s32.totalorder %s94, %s108
      %p110 = scmp.eq.s32.totalorder %s26, 0
      %p111 = por %p109, %p110
      %s112 = ssub.s32 %s20, %s27
      %p113 = scmp.eq.s32.totalorder %s112, 0
      %s115 = sadd.s32 %s114, 1
      %s116 = scalar_select %p113, %s114, %s115
      %p119 = pneg %p113
      %p120 = scmp.eq.s32.totalorder %s20, 2
      %p121 = por %p119, %p120
      %p122 = scmp.ne.s32.totalorder %s114, %s117
      %p123 = scmp.eq.s32.totalorder %s20, 0
      %p124 = por %p122, %p123
      %p125 = scmp.ne.s32.totalorder %s114, %s117
      %p126 = scmp.eq.s32.totalorder %s25, 2
      %p127 = por %p125, %p126
      %p128 = scmp.ne.s32.totalorder %s117, %s118
      %p129 = scmp.eq.s32.totalorder %s25, 0
      %p130 = por %p128, %p129
      %p131 = scmp.ne.s32.totalorder %s117, %s118
      %p132 = scmp.eq.s32.totalorder %s26, 2
      %p133 = por %p131, %p132
      %p135 = scmp.ne.s32.totalorder %s118, %s134
      %p136 = scmp.eq.s32.totalorder %s26, 0
      %p137 = por %p135, %p136
      %s138 = ssub.s32 %s20, %s27
      %p139 = scmp.eq.s32.totalorder %s138, 0
      %s141 = sadd.s32 %s140, 1
      %s142 = scalar_select %p139, %s140, %s141
      %p145 = pneg %p139
      %p146 = scmp.eq.s32.totalorder %s20, 2
      %p147 = por %p145, %p146
      %p148 = scmp.ne.s32.totalorder %s140, %s143
      %p149 = scmp.eq.s32.totalorder %s20, 0
      %p150 = por %p148, %p149
      %p151 = scmp.ne.s32.totalorder %s140, %s143
      %p152 = scmp.eq.s32.totalorder %s25, 2
      %p153 = por %p151, %p152
      %p154 = scmp.ne.s32.totalorder %s143, %s144
      %p155 = scmp.eq.s32.totalorder %s25, 0
      %p156 = por %p154, %p155
      %p157 = scmp.ne.s32.totalorder %s143, %s144
      %p158 = scmp.eq.s32.totalorder %s26, 2
      %p159 = por %p157, %p158
      %p161 = scmp.ne.s32.totalorder %s144, %s160
      %p162 = scmp.eq.s32.totalorder %s26, 0
      %p163 = por %p161, %p162
      %p164 = scmp.le.s32.totalorder 1, %s20
      %p165 = scmp.lt.s32.totalorder %s20, 4
      %p166 = pnand %p164, %p165
      %p167 = pneg %p166
      // Predicated region
      $region9: #{tpu_custom_call.1} parent=5 // pred_check
        _
      $region10: #{tpu_custom_call.1} parent=5 // pred_check_branch
        %169 = sbr.rel (%p166) target = $region12
      $region11: #{tpu_custom_call.1} parent=5 // pred_region
        %s170 = ssub.s32 %s20, 1
        // Predicated region
        $region13: #{tpu_custom_call.1} parent=11 // pred_check
          %p171 = pneg %p41
        $region14: #{tpu_custom_call.1} parent=11 // pred_check_branch
          %173 = sbr.rel (%p171) target = $region16
        $region15: #{tpu_custom_call.1} parent=11 // pred_region
          %s175 = ssub.s32 16, 16
          %176 = vsyncadd [#allocation6], %s175
          %s178 = sshll.u32 %s0, 4
          %s179 = int_to_ptr.vmem [resolvable:$true] %s178
          %181 = dma.vmem_to_smem %s179, 16, [#allocation3], [#allocation6]
        $region16: #{tpu_custom_call.1} parent=11 // pred_fallthru
          _
        // Predicated region
        $region17: #{tpu_custom_call.1} parent=11 // pred_check
          %p182 = pneg %p62
        $region18: #{tpu_custom_call.1} parent=11 // pred_check_branch
          %184 = sbr.rel (%p182) target = $region20
        $region19: #{tpu_custom_call.1} parent=11 // pred_region
          %s186 = ssub.s32 16, 16
          %187 = vsyncadd [#allocation8], %s186
          %s189 = sshll.u32 %s1, 4
          %s190 = int_to_ptr.vmem [resolvable:$true] %s189
          %192 = dma.vmem_to_smem %s190, 16, [#allocation7], [#allocation8]
        $region20: #{tpu_custom_call.1} parent=11 // pred_fallthru
          _
        // Predicated region
        $region21: #{tpu_custom_call.1} parent=11 // pred_check
          %p193 = pneg %p83
        $region22: #{tpu_custom_call.1} parent=11 // pred_check_branch
          %195 = sbr.rel (%p193) target = $region24
        $region23: #{tpu_custom_call.1} parent=11 // pred_region
          %s197 = ssub.s32 16, 16
          %198 = vsyncadd [#allocation8], %s197
          %s200 = sshll.u32 %s2, 4
          %s201 = int_to_ptr.vmem [resolvable:$true] %s200
          %203 = dma.vmem_to_smem %s201, 16, [#allocation9], [#allocation8]
        $region24: #{tpu_custom_call.1} parent=11 // pred_fallthru
          _
        // Predicated region
        $region25: #{tpu_custom_call.1} parent=11 // pred_check
          %p204 = pneg %p104
        $region26: #{tpu_custom_call.1} parent=11 // pred_check_branch
          %206 = sbr.rel (%p204) target = $region28
        $region27: #{tpu_custom_call.1} parent=11 // pred_region
          _
        $region28: #{tpu_custom_call.1} parent=11 // pred_fallthru
          _
      $region12: #{tpu_custom_call.1} parent=5 // pred_fallthru
        _
      %p207 = scmp.lt.s32.totalorder %s20, 3
      // Predicated region
      $region29: #{tpu_custom_call.1} parent=5 // pred_check
        %p208 = pneg %p207
      $region30: #{tpu_custom_call.1} parent=5 // pred_check_branch
        %210 = sbr.rel (%p208) target = $region32
      $region31: #{tpu_custom_call.1} parent=5 // pred_region
        // Predicated region
        $region33: #{tpu_custom_call.1} parent=31 // pred_check
          %p211 = pneg %p124
        $region34: #{tpu_custom_call.1} parent=31 // pred_check_branch
          %213 = sbr.rel (%p211) target = $region36
        $region35: #{tpu_custom_call.1} parent=31 // pred_region
          %s214 = sand.u32 %s114, 1
          %s215 = scalar_lea.sflag [#allocation4], %s214
          %s216 = sand.u32 %s114, 1
          %s217 = smul.addr %s216, 32
          %s218 = scalar_lea.vmem [#allocation10], %s217
          %s220 = ssub.s32 512, 512
          %221 = vsyncadd %s215, %s220
          %s222 = smul.addr %s20, 128
          %s223 = scalar_lea.hbm %s4, %s222
          %s224 = sshll.u32 %s218, 4
          %s225 = int_to_ptr.vmem [resolvable:$true] %s224
          %230 = dma.hbm_to_vmem [thread:$0]  %s223, 512, %s225, %s215, 384, 128, 8
        $region36: #{tpu_custom_call.1} parent=31 // pred_fallthru
          _
      $region32: #{tpu_custom_call.1} parent=5 // pred_fallthru
        _
      %p231 = scmp.le.s32.totalorder 1, %s20
      %p232 = scmp.lt.s32.totalorder %s20, 4
      %p233 = pnand %p231, %p232
      %p234 = pneg %p233
      // Predicated region
      $region37: #{tpu_custom_call.1} parent=5 // pred_check
        _
      $region38: #{tpu_custom_call.1} parent=5 // pred_check_branch
        %236 = sbr.rel (%p233) target = $region40
      $region39: #{tpu_custom_call.1} parent=5 // pred_region
        %s237 = ssub.s32 %s20, 1
        // Predicated region
        $region41: #{tpu_custom_call.1} parent=39 // pred_check
          %p238 = pneg %p41
        $region42: #{tpu_custom_call.1} parent=39 // pred_check_branch
          %240 = sbr.rel (%p238) target = $region44
        $region43: #{tpu_custom_call.1} parent=39 // pred_region
          %241 = dma.done [#allocation6], 16
        $region44: #{tpu_custom_call.1} parent=39 // pred_fallthru
          _
        // Predicated region
        $region45: #{tpu_custom_call.1} parent=39 // pred_check
          %p242 = pneg %p62
        $region46: #{tpu_custom_call.1} parent=39 // pred_check_branch
          %244 = sbr.rel (%p242) target = $region48
        $region47: #{tpu_custom_call.1} parent=39 // pred_region
          %245 = dma.done [#allocation8], 16
        $region48: #{tpu_custom_call.1} parent=39 // pred_fallthru
          _
        // Predicated region
        $region49: #{tpu_custom_call.1} parent=39 // pred_check
          %p246 = pneg %p83
        $region50: #{tpu_custom_call.1} parent=39 // pred_check_branch
          %248 = sbr.rel (%p246) target = $region52
        $region51: #{tpu_custom_call.1} parent=39 // pred_region
          %249 = dma.done [#allocation8], 16
        $region52: #{tpu_custom_call.1} parent=39 // pred_fallthru
          _
        %s250 = sand.u32 %s117, 1
        %s251 = scalar_lea.sflag [#allocation4], %s250
        %s252 = sand.u32 %s117, 1
        %s253 = smul.addr %s252, 32
        %s254 = scalar_lea.vmem [#allocation10], %s253
        // Predicated region
        $region53: #{tpu_custom_call.1} parent=39 // pred_check
          %p255 = pneg %p130
        $region54: #{tpu_custom_call.1} parent=39 // pred_check_branch
          %257 = sbr.rel (%p255) target = $region56
        $region55: #{tpu_custom_call.1} parent=39 // pred_region
          %258 = dma.done %s251, 512
        $region56: #{tpu_custom_call.1} parent=39 // pred_fallthru
          _
        %259 = sfence
        %p260 = pneg %p41
        %p261 = pneg %p38
        %p262 = pneg %p62
        %p263 = pneg %p59
        %p264 = pneg %p83
        %p265 = pneg %p80
        %p266 = pneg %p104
        %p267 = pneg %p101
        %s268 = sand.u32 %s117, 1
        %s269 = scalar_lea.sflag [#allocation4], %s268
        %s270 = sand.u32 %s117, 1
        %s271 = smul.addr %s270, 32
        %s272 = scalar_lea.vmem [#allocation10], %s271
        %p273 = pneg %p130
        %p274 = pneg %p127
        %p275 = pneg %p156
        %p276 = pneg %p153
        %s277 = sand.u32 %s143, 1
        %s278 = scalar_lea.sflag [#allocation5], %s277
        %s279 = sand.u32 %s143, 1
        %s280 = smul.addr %s279, 8
        %s281 = scalar_lea.vmem [#allocation11], %s280
        %v282 = vld [vmem:[%s254] sm:$0xff]
        %v283 = vld [vmem:[%s254 + $0x8] sm:$0xff]
        %v284 = vld [vmem:[%s254 + $0x10] sm:$0xff]
        %v285 = vld [vmem:[%s254 + $0x18] sm:$0xff]
        %s286 = sld [smem:[#allocation9]]
        %s287 = sld [smem:[#allocation3]]
        %v288 = vstv %s287
        %v289 = vmul.f32 %v288, %v282
        %s290 = sld [smem:[#allocation3 + $0x1]]
        %v291 = vstv %s290
        %v292 = vmul.f32 %v291, %v283
        %v293 = vadd.f32 %v289, %v292
        %s294 = sld [smem:[#allocation3 + $0x2]]
        %v295 = vstv %s294
        %v296 = vmul.f32 %v295, %v284
        %v297 = vadd.f32 %v293, %v296
        %s298 = sld [smem:[#allocation3 + $0x3]]
        %v299 = vstv %s298
        %v300 = vmul.f32 %v299, %v285
        %v301 = vadd.f32 %v297, %v300
        %s302 = sld [smem:[#allocation7]]
        %v303 = vstv %s302
        %v304 = vadd.f32 %v301, %v303
        %v305 = vmax.f32 %v304, 0.0
        %v306 = vstv %s286
        %v307 = vmul.f32 %v306, %v305
        %s308 = sld [smem:[#allocation2]]
        %v309 = vstv %s308
        %v310 = vadd.f32 %v307, %v309
        %s311 = sld [smem:[#allocation9 + $0x1]]
        %s312 = sld [smem:[#allocation3 + $0x4]]
        %v313 = vstv %s312
        %v314 = vmul.f32 %v313, %v282
        %s315 = sld [smem:[#allocation3 + $0x5]]
        %v316 = vstv %s315
        %v317 = vmul.f32 %v316, %v283
        %v318 = vadd.f32 %v314, %v317
        %s319 = sld [smem:[#allocation3 + $0x6]]
        %v320 = vstv %s319
        %v321 = vmul.f32 %v320, %v284
        %v322 = vadd.f32 %v318, %v321
        %s323 = sld [smem:[#allocation3 + $0x7]]
        %v324 = vstv %s323
        %v325 = vmul.f32 %v324, %v285
        %v326 = vadd.f32 %v322, %v325
        %s327 = sld [smem:[#allocation7 + $0x1]]
        %v328 = vstv %s327
        %v329 = vadd.f32 %v326, %v328
        %v330 = vmax.f32 %v329, 0.0
        %v331 = vstv %s311
        %v332 = vmul.f32 %v331, %v330
        %v333 = vadd.f32 %v310, %v332
        %s334 = sld [smem:[#allocation9 + $0x2]]
        %s335 = sld [smem:[#allocation3 + $0x8]]
        %v336 = vstv %s335
        %v337 = vmul.f32 %v336, %v282
        %s338 = sld [smem:[#allocation3 + $0x9]]
        %v339 = vstv %s338
        %v340 = vmul.f32 %v339, %v283
        %v341 = vadd.f32 %v337, %v340
        %s342 = sld [smem:[#allocation3 + $0xa]]
        %v343 = vstv %s342
        %v344 = vmul.f32 %v343, %v284
        %v345 = vadd.f32 %v341, %v344
        %s346 = sld [smem:[#allocation3 + $0xb]]
        %v347 = vstv %s346
        %v348 = vmul.f32 %v347, %v285
        %v349 = vadd.f32 %v345, %v348
        %s350 = sld [smem:[#allocation7 + $0x2]]
        %v351 = vstv %s350
        %v352 = vadd.f32 %v349, %v351
        %v353 = vmax.f32 %v352, 0.0
        %v354 = vstv %s334
        %v355 = vmul.f32 %v354, %v353
        %v356 = vadd.f32 %v333, %v355
        %357 = vst [vmem:[%s281] sm:$0xff] %v356
        %s358 = sand.u32 %s143, 1
        %s359 = scalar_lea.sflag [#allocation5], %s358
        %s360 = sand.u32 %s143, 1
        %s361 = smul.addr %s360, 8
        %s362 = scalar_lea.vmem [#allocation11], %s361
        // Predicated region
        $region57: #{tpu_custom_call.1} parent=39 // pred_check
          %p363 = pneg %p153
        $region58: #{tpu_custom_call.1} parent=39 // pred_check_branch
          %365 = sbr.rel (%p363) target = $region60
        $region59: #{tpu_custom_call.1} parent=39 // pred_region
          %s367 = ssub.s32 128, 128
          %368 = vsyncadd %s359, %s367
          %s369 = smul.addr %s25, 128
          %s370 = scalar_lea.hbm %s5, %s369
          %s372 = sshll.u32 %s362, 4
          %s373 = int_to_ptr.vmem [resolvable:$true] %s372
          %375 = dma.vmem_to_hbm [thread:$0]  %s373, 128, %s370, %s359
        $region60: #{tpu_custom_call.1} parent=39 // pred_fallthru
          _
      $region40: #{tpu_custom_call.1} parent=5 // pred_fallthru
        _
      %p376 = scmp.le.s32.totalorder 2, %s20
      // Predicated region
      $region61: #{tpu_custom_call.1} parent=5 // pred_check
        %p377 = pneg %p376
      $region62: #{tpu_custom_call.1} parent=5 // pred_check_branch
        %379 = sbr.rel (%p377) target = $region64
      $region63: #{tpu_custom_call.1} parent=5 // pred_region
        %s380 = ssub.s32 %s20, 2
        // Predicated region
        $region65: #{tpu_custom_call.1} parent=63 // pred_check
          %p381 = pneg %p159
        $region66: #{tpu_custom_call.1} parent=63 // pred_check_branch
          %383 = sbr.rel (%p381) target = $region68
        $region67: #{tpu_custom_call.1} parent=63 // pred_region
          %s384 = sand.u32 %s144, 1
          %s385 = scalar_lea.sflag [#allocation5], %s384
          %s386 = sand.u32 %s144, 1
          %s387 = smul.addr %s386, 8
          %s388 = scalar_lea.vmem [#allocation11], %s387
          %389 = dma.done %s385, 128
        $region68: #{tpu_custom_call.1} parent=63 // pred_fallthru
          _
      $region64: #{tpu_custom_call.1} parent=5 // pred_fallthru
        _
    $region6: #{tpu_custom_call.1} parent=1 // loop_footer
      %s24 = sadd.s32 1, %s20
    $region7: #{tpu_custom_call.1} parent=1 // loop_footer_branch
      %19 = sbr.rel target = $region3
    $region8: #{tpu_custom_call.1} parent=1 // loop_exit
      _
    %390 = vsyncpa [#allocation4], 1
    %s391 = scalar_lea.sflag [#allocation4], 1
    %392 = vsyncpa %s391, 1
    %393 = vsyncpa [#allocation5], 1
    %s394 = scalar_lea.sflag [#allocation5], 1
    %395 = vsyncpa %s394, 1
    %396 = vsyncpa [#allocation6], 1
    %s397 = scalar_lea.sflag [#allocation6], 1
    %398 = vsyncpa %s397, 1
    %399 = vsyncpa [#allocation8], 1

</llo_original>
